<compile_context>
chip_gen: v7x
topology: tpu7x:2x2x1
jax: 0.10.0
libtpu: 0.0.40
codegen_flags: <defaults>
</compile_context>

<pallas_src>
import functools

import jax
import jax.numpy as jnp
import numpy as np
from jax.experimental import pallas as pl
from jax.experimental.pallas import tpu as pltpu


# ----------------------------------------------------------------------------
# Pallas kernel: one grid step == `imgs` images stacked along H (shared halos).
# ----------------------------------------------------------------------------
def _conv_track_kernel(xp_ref, wb_ref, b_ref, sel_ref, out_ref, stats_ref,
                       *, h, pad, imgs):
    """
    xp_ref    : (rows_step, kpad)      bf16 padded image rows, images stacked
                                       along H with shared halo rows
    wb_ref    : (KH, kpad, W*C_out)    bf16 banded weights (KW, C_in folded in)
    b_ref     : (1, W*C_out)           f32 bias replicated per output column
    sel_ref   : (W*C_out, 128)         f32 column -> channel selector (0/1)
    out_ref   : (imgs*H, W*C_out)      f32 conv output (lane-dense last dim)
    stats_ref : (1, 2, 128)            f32 per-step [sum; sum-of-squares] of the
                                       PRE-BIAS conv values, folded to channels
    """
    kh = wb_ref.shape[0]
    wcout = out_ref.shape[-1]
    stride = h + pad                       # per-image row stride in the stack
    rows_acc = imgs * stride - pad         # valid + (imgs-1) boundary rows

    # Conv hot path: KH matmuls over the WHOLE stacked block (M = rows_acc),
    # f32 accumulation on the MXU.  Row taps are static slices of the VMEM
    # block -> no 9x patch matrix in HBM (im2col stays fused in the kernel).
    acc = jnp.dot(xp_ref[0:rows_acc, :], wb_ref[0],
                  preferred_element_type=jnp.float32)
    for di in range(1, kh):                # static unroll (KH == 3)
        acc = acc + jnp.dot(xp_ref[di:di + rows_acc, :], wb_ref[di],
                            preferred_element_type=jnp.float32)

    bias_row = b_ref[...]                  # (1, W*C_out) f32

    # Per-image extraction (skips the shared-halo boundary rows), bias add at
    # store time, and BN partial stats on the pre-bias values (centered stats).
    row_sum = jnp.zeros((1, wcout), jnp.float32)
    row_ssq = jnp.zeros((1, wcout), jnp.float32)
    for b in range(imgs):                  # static unroll
        yb = acc[b * stride:b * stride + h, :]                 # (H, W*C_out)
        out_ref[b * h:(b + 1) * h, :] = (yb + bias_row).astype(out_ref.dtype)
        row_sum = row_sum + jnp.sum(yb, axis=0, keepdims=True)
        row_ssq = row_ssq + jnp.sum(yb * yb, axis=0, keepdims=True)

    # Fold the (j, o)-interleaved columns back to channels with ONE tiny matmul
    # (stacked sum/ssq), emitted as a lane-dense (2, 128) slab.
    stats2 = jnp.concatenate([row_sum, row_ssq], axis=0)       # (2, W*C_out)
    folded = jnp.dot(stats2, sel_ref[...],
                     preferred_element_type=jnp.float32)       # (2, 128)
    stats_ref[...] = folded.reshape(1, 2, folded.shape[-1])


def _pick_images_per_step(n, h, pad, rows_target=256):
    """Largest divisor of n whose stacked matmul M stays near the MXU row count.

    For small batches this collapses the grid to one step (removes ~0.35 us of
    per-step overhead on the 1-TC v5e/v6e); for larger N it naturally keeps
    multiple "parallel" steps so both v7x TensorCores get work.
    """
    best = 1
    for b in range(1, n + 1):
        if n % b == 0 and b * (h + pad) <= rows_target:
            best = b
    return best


@jax.jit
def track_layer_forward(x_nchw, weight, bias, running_mean, running_var,
                        momentum=0.1):
    """Forward of TrackLayer.

    x_nchw : (N, C_in, H, W)   weight : (C_out, C_in, KH, KW)   bias : (C_out,)
    Returns (x1_nchw, new_running_mean, new_running_var).
    """
    n, c_in, h, w = x_nchw.shape
    c_out, _, kh, kw = weight.shape
    pad = kh // 2
    wp = w + 2 * pad
    wcout = w * c_out
    kdim = wp * c_in
    kpad = ((kdim + 127) // 128) * 128          # contraction dim padded to lanes
    lanes = ((max(c_out, 1) + 127) // 128) * 128
    assert h % 8 == 0, "H must be a multiple of 8 (sublane alignment)"

    imgs = _pick_images_per_step(n, h, pad)     # images per grid step
    num_steps = n // imgs
    stride = h + pad
    rows_data = pad + imgs * stride             # shared-halo stacked rows
    rows_step = ((rows_data + 15) // 16) * 16   # bf16 sublane tile = 16

    # --- input layout: zero padding only, images stacked with shared halos ---
    x_nhwc = jnp.transpose(x_nchw, (0, 2, 3, 1)).astype(jnp.bfloat16)
    rows = jnp.pad(x_nhwc.reshape(n, h, w * c_in),
                   ((0, 0), (0, 0), (pad * c_in, kpad - kdim + pad * c_in)))
    rows = jnp.pad(rows, ((0, 0), (0, pad), (0, 0)))     # one shared halo row/img
    rows = rows.reshape(num_steps, imgs * stride, kpad)
    xp = jnp.pad(rows, ((0, 0), (pad, rows_step - rows_data), (0, 0)))
    xp2d = xp.reshape(num_steps * rows_step, kpad)       # (steps*rows_step, kpad)

    # --- banded weights via ONE einsum against a constant banding tensor -----
    # wband[di, jin*C_in + c, j*C_out + o] = weight[o, c, di, jin - j]
    band = np.zeros((kw, wp, w), np.float32)
    for dj in range(kw):
        band[dj, np.arange(w) + dj, np.arange(w)] = 1.0
    w_taps = jnp.transpose(weight.astype(jnp.float32), (2, 3, 1, 0))  # (KH,KW,Cin,Cout)
    wband = jnp.einsum('dpj,kdco->kpcjo', jnp.asarray(band), w_taps)
    wband = wband.reshape(kh, kdim, wcout)
    wband = jnp.pad(wband, ((0, 0), (0, kpad - kdim), (0, 0))).astype(jnp.bfloat16)

    bias_row = jnp.tile(bias.astype(jnp.float32), w).reshape(1, wcout)
    sel = jnp.tile(jnp.eye(c_out, dtype=jnp.float32), (w, 1))          # (W*Cout, Cout)
    sel = jnp.pad(sel, ((0, 0), (0, lanes - c_out)))                   # lane-dense

    flops = 2 * n * h * w * kh * kw * c_in * c_out
    bytes_accessed = (2 * num_steps * rows_step * kpad        # bf16 input rows
                      + 2 * kh * kpad * wcout                 # bf16 banded weights
                      + 4 * wcout + 4 * wcout * lanes         # bias + selector
                      + 4 * n * h * wcout                     # f32 conv output
                      + 4 * num_steps * 2 * lanes)            # stats slab

    kernel = functools.partial(_conv_track_kernel, h=h, pad=pad, imgs=imgs)

    out2d, stats = pl.pallas_call(
        kernel,
        out_shape=(
            jax.ShapeDtypeStruct((n * h, wcout), jnp.float32),      # conv output
            jax.ShapeDtypeStruct((num_steps, 2, lanes), jnp.float32),  # BN partials
        ),
        grid_spec=pltpu.PrefetchScalarGridSpec(
            num_scalar_prefetch=0,
            grid=(num_steps,),
            in_specs=[
                pl.BlockSpec((rows_step, kpad), lambda i: (i, 0)),      # stacked rows
                pl.BlockSpec((kh, kpad, wcout), lambda i: (0, 0, 0)),   # banded weights
                pl.BlockSpec((1, wcout), lambda i: (0, 0)),             # bias row
                pl.BlockSpec((wcout, lanes), lambda i: (0, 0)),         # selector
            ],
            out_specs=[
                pl.BlockSpec((imgs * h, wcout), lambda i: (i, 0)),      # lane-dense out
                pl.BlockSpec((1, 2, lanes), lambda i: (i, 0, 0)),       # stats slab
            ],
        ),
        compiler_params=pltpu.CompilerParams(
            dimension_semantics=("parallel",),       # steps independent (v7x: 2 TCs)
            vmem_limit_bytes=32 * 1024 * 1024,       # well above need on all gens
        ),
        cost_estimate=pl.CostEstimate(flops=flops, transcendentals=0,
                                      bytes_accessed=bytes_accessed),
    )(xp2d, wband, bias_row, sel)

    # --- BatchNorm2d running-stat update (the side effect of bn(x1)) --------
    # Stats are of (y - bias): centered, so E[x^2]-E[x]^2 is well conditioned.
    cnt = jnp.float32(n * h * w)
    cs = jnp.sum(stats[:, 0, :c_out], axis=0)       # sum of (y - bias)
    css = jnp.sum(stats[:, 1, :c_out], axis=0)      # sum of (y - bias)^2
    mean_c = cs / cnt
    batch_mean = mean_c + bias.astype(jnp.float32)
    batch_var = jnp.maximum(css / cnt - mean_c * mean_c, 0.0)
    unbiased_var = batch_var * cnt / jnp.maximum(cnt - 1.0, 1.0)   # torch running_var
    new_rm = (1.0 - momentum) * running_mean + momentum * batch_mean
    new_rv = (1.0 - momentum) * running_var + momentum * unbiased_var

    # --- back to NCHW like the torch module ----------------------------------
    x1 = out2d.reshape(n, h, w, c_out).transpose(0, 3, 1, 2)
    return x1, new_rm, new_rv


if __name__ == "__main__":
    # Wrapped layer: nn.Conv2d(4, 8, kernel_size=3, padding=1)
    N, C_IN, H, W = 2, 4, 16, 16
    C_OUT, KH, KW = 8, 3, 3

    key = jax.random.PRNGKey(0)
    kx, kw_, kb = jax.random.split(key, 3)
    x = jax.random.normal(kx, (N, C_IN, H, W), dtype=jnp.float32)
    weight = jax.random.normal(kw_, (C_OUT, C_IN, KH, KW), dtype=jnp.float32) * 0.1
    bias = jax.random.normal(kb, (C_OUT,), dtype=jnp.float32) * 0.1
    running_mean = jnp.zeros((C_OUT,), jnp.float32)   # BatchNorm2d init
    running_var = jnp.ones((C_OUT,), jnp.float32)

    x1, rm, rv = track_layer_forward(x, weight, bias, running_mean, running_var)
    jax.block_until_ready((x1, rm, rv))

    # --- validation against a high-precision XLA reference (conv + bias) ----
    # (kernel conv runs at MXU default precision, i.e. bf16 operands: intentional)
    ref = jax.lax.conv_general_dilated(
        x, weight, window_strides=(1, 1), padding="SAME",
        dimension_numbers=("NCHW", "OIHW", "NCHW"),
        precision=jax.lax.Precision.HIGHEST) + bias.reshape(1, C_OUT, 1, 1)
    assert x1.shape == (N, C_OUT, H, W)
    assert jnp.allclose(x1, ref, atol=3e-2, rtol=1e-2), \
        float(jnp.max(jnp.abs(x1 - ref)))

    # BN running-stat side effect: compare against a direct reference.
    cnt = N * H * W
    bm_ref = jnp.mean(ref, axis=(0, 2, 3))
    bv_ref = jnp.var(ref, axis=(0, 2, 3)) * cnt / (cnt - 1)
    rm_ref = 0.9 * running_mean + 0.1 * bm_ref
    rv_ref = 0.9 * running_var + 0.1 * bv_ref
    assert jnp.allclose(rm, rm_ref, atol=2e-2, rtol=2e-2)
    assert jnp.allclose(rv, rv_ref, atol=2e-2, rtol=2e-2)

    print("KERNEL_OK")
</pallas_src>

<mosaic_0001>
module attributes {stable_mosaic.version = 11 : i64} {
  func.func @_conv_track_kernel(%arg0: i32, %arg1: memref<48x128xbf16, #tpu.memory_space<vmem>>, %arg2: memref<3x128x128xbf16, #tpu.memory_space<vmem>>, %arg3: memref<1x128xf32, #tpu.memory_space<vmem>>, %arg4: memref<128x128xf32, #tpu.memory_space<vmem>>, %arg5: memref<32x128xf32, #tpu.memory_space<vmem>>, %arg6: memref<1x2x128xf32, #tpu.memory_space<vmem>>) attributes {dimension_semantics = [#tpu.dimension_semantics<parallel>], iteration_bounds = array<i64: 1>, scalar_prefetch = 0 : i64, scratch_operands = 0 : i64, tpu.core_type = #tpu.core_type<tc>, window_params = [{transform_indices = @transform_0, window_bounds = array<i64: 48, 128>}, {pipeline_mode = #tpu.pipeline_mode<synchronous>, transform_indices = @transform_1, window_bounds = array<i64: 3, 128, 128>}, {pipeline_mode = #tpu.pipeline_mode<synchronous>, transform_indices = @transform_2, window_bounds = array<i64: 1, 128>}, {pipeline_mode = #tpu.pipeline_mode<synchronous>, transform_indices = @transform_3, window_bounds = array<i64: 128, 128>}, {transform_indices = @transform_4, window_bounds = array<i64: 32, 128>}, {transform_indices = @transform_5, window_bounds = array<i64: 1, 2, 128>}]} {
    %c0 = arith.constant 0 : index
    %c0_0 = arith.constant 0 : index
    %0 = vector.load %arg1[%c0, %c0_0] : memref<48x128xbf16, #tpu.memory_space<vmem>>, vector<33x128xbf16>
    %c0_1 = arith.constant 0 : index
    %c0_2 = arith.constant 0 : index
    %c0_3 = arith.constant 0 : index
    %1 = vector.load %arg2[%c0_1, %c0_2, %c0_3] : memref<3x128x128xbf16, #tpu.memory_space<vmem>>, vector<1x128x128xbf16>
    %2 = vector.shape_cast %1 : vector<1x128x128xbf16> to vector<128x128xbf16>
    %cst = arith.constant dense<0.000000e+00> : vector<33x128xf32>
    %3 = tpu.matmul %0, %2, %cst {dimension_numbers = #tpu.dot_dimension_numbers<[1], [0], [0], [1], [0, 0, 1, 1], [], []>} : vector<33x128xbf16>, vector<128x128xbf16>, vector<33x128xf32> -> vector<33x128xf32>
    %c1 = arith.constant 1 : index
    %c0_4 = arith.constant 0 : index
    %4 = vector.load %arg1[%c1, %c0_4] : memref<48x128xbf16, #tpu.memory_space<vmem>>, vector<33x128xbf16>
    %c1_5 = arith.constant 1 : index
    %c0_6 = arith.constant 0 : index
    %c0_7 = arith.constant 0 : index
    %5 = vector.load %arg2[%c1_5, %c0_6, %c0_7] : memref<3x128x128xbf16, #tpu.memory_space<vmem>>, vector<1x128x128xbf16>
    %6 = vector.shape_cast %5 : vector<1x128x128xbf16> to vector<128x128xbf16>
    %cst_8 = arith.constant dense<0.000000e+00> : vector<33x128xf32>
    %7 = tpu.matmul %4, %6, %cst_8 {dimension_numbers = #tpu.dot_dimension_numbers<[1], [0], [0], [1], [0, 0, 1, 1], [], []>} : vector<33x128xbf16>, vector<128x128xbf16>, vector<33x128xf32> -> vector<33x128xf32>
    %8 = arith.addf %3, %7 : vector<33x128xf32>
    %c2 = arith.constant 2 : index
    %c0_9 = arith.constant 0 : index
    %9 = vector.load %arg1[%c2, %c0_9] : memref<48x128xbf16, #tpu.memory_space<vmem>>, vector<33x128xbf16>
    %c2_10 = arith.constant 2 : index
    %c0_11 = arith.constant 0 : index
    %c0_12 = arith.constant 0 : index
    %10 = vector.load %arg2[%c2_10, %c0_11, %c0_12] : memref<3x128x128xbf16, #tpu.memory_space<vmem>>, vector<1x128x128xbf16>
    %11 = vector.shape_cast %10 : vector<1x128x128xbf16> to vector<128x128xbf16>
    %cst_13 = arith.constant dense<0.000000e+00> : vector<33x128xf32>
    %12 = tpu.matmul %9, %11, %cst_13 {dimension_numbers = #tpu.dot_dimension_numbers<[1], [0], [0], [1], [0, 0, 1, 1], [], []>} : vector<33x128xbf16>, vector<128x128xbf16>, vector<33x128xf32> -> vector<33x128xf32>
    %13 = arith.addf %8, %12 : vector<33x128xf32>
    %c0_14 = arith.constant 0 : index
    %c0_15 = arith.constant 0 : index
    %14 = vector.load %arg3[%c0_14, %c0_15] : memref<1x128xf32, #tpu.memory_space<vmem>>, vector<1x128xf32>
    %cst_16 = arith.constant 0.000000e+00 : f32
    %15 = vector.broadcast %cst_16 : f32 to vector<1x128xf32>
    %cst_17 = arith.constant 0.000000e+00 : f32
    %16 = vector.broadcast %cst_17 : f32 to vector<1x128xf32>
    %17 = vector.extract_strided_slice %13 {offsets = [0, 0], sizes = [16, 128], strides = [1, 1]} : vector<33x128xf32> to vector<16x128xf32>
    %18 = vector.broadcast %14 : vector<1x128xf32> to vector<16x128xf32>
    %19 = arith.addf %17, %18 : vector<16x128xf32>
    %c0_18 = arith.constant 0 : index
    %c0_19 = arith.constant 0 : index
    %20 = vector.load %arg5[%c0_18, %c0_19] : memref<32x128xf32, #tpu.memory_space<vmem>>, vector<16x128xf32>
    tpu.vector_store %arg5[%c0_18, %c0_19], %19 {strides = array<i32>} : memref<32x128xf32, #tpu.memory_space<vmem>>, vector<16x128xf32>,
    %cst_20 = arith.constant dense<0.000000e+00> : vector<128xf32>
    %21 = vector.multi_reduction <add>, %17, %cst_20 [0] : vector<16x128xf32> to vector<128xf32>
    %22 = vector.shape_cast %21 : vector<128xf32> to vector<1x128xf32>
    %23 = arith.addf %15, %22 : vector<1x128xf32>
    %24 = arith.mulf %17, %17 : vector<16x128xf32>
    %cst_21 = arith.constant dense<0.000000e+00> : vector<128xf32>
    %25 = vector.multi_reduction <add>, %24, %cst_21 [0] : vector<16x128xf32> to vector<128xf32>
    %26 = vector.shape_cast %25 : vector<128xf32> to vector<1x128xf32>
    %27 = arith.addf %16, %26 : vector<1x128xf32>
    %28 = vector.extract_strided_slice %13 {offsets = [17, 0], sizes = [16, 128], strides = [1, 1]} : vector<33x128xf32> to vector<16x128xf32>
    %29 = vector.broadcast %14 : vector<1x128xf32> to vector<16x128xf32>
    %30 = arith.addf %28, %29 : vector<16x128xf32>
    %c16 = arith.constant 16 : index
    %c0_22 = arith.constant 0 : index
    %31 = vector.load %arg5[%c16, %c0_22] : memref<32x128xf32, #tpu.memory_space<vmem>>, vector<16x128xf32>
    tpu.vector_store %arg5[%c16, %c0_22], %30 {strides = array<i32>} : memref<32x128xf32, #tpu.memory_space<vmem>>, vector<16x128xf32>,
    %cst_23 = arith.constant dense<0.000000e+00> : vector<128xf32>
    %32 = vector.multi_reduction <add>, %28, %cst_23 [0] : vector<16x128xf32> to vector<128xf32>
    %33 = vector.shape_cast %32 : vector<128xf32> to vector<1x128xf32>
    %34 = arith.addf %23, %33 : vector<1x128xf32>
    %35 = arith.mulf %28, %28 : vector<16x128xf32>
    %cst_24 = arith.constant dense<0.000000e+00> : vector<128xf32>
    %36 = vector.multi_reduction <add>, %35, %cst_24 [0] : vector<16x128xf32> to vector<128xf32>
    %37 = vector.shape_cast %36 : vector<128xf32> to vector<1x128xf32>
    %38 = arith.addf %27, %37 : vector<1x128xf32>
    %39 = tpu.concatenate %34, %38 in 0 : vector<1x128xf32>, vector<1x128xf32> -> vector<2x128xf32>
    %c0_25 = arith.constant 0 : index
    %c0_26 = arith.constant 0 : index
    %40 = vector.load %arg4[%c0_25, %c0_26] : memref<128x128xf32, #tpu.memory_space<vmem>>, vector<128x128xf32>
    %cst_27 = arith.constant dense<0.000000e+00> : vector<2x128xf32>
    %41 = tpu.matmul %39, %40, %cst_27 {dimension_numbers = #tpu.dot_dimension_numbers<[1], [0], [0], [1], [0, 0, 1, 1], [], []>} : vector<2x128xf32>, vector<128x128xf32>, vector<2x128xf32> -> vector<2x128xf32>
    %42 = vector.shape_cast %41 : vector<2x128xf32> to vector<1x2x128xf32>
    %c0_28 = arith.constant 0 : index
    %c0_29 = arith.constant 0 : index
    %c0_30 = arith.constant 0 : index
    %43 = vector.load %arg6[%c0_28, %c0_29, %c0_30] : memref<1x2x128xf32, #tpu.memory_space<vmem>>, vector<1x2x128xf32>
    tpu.vector_store %arg6[%c0_28, %c0_29, %c0_30], %42 {strides = array<i32>} : memref<1x2x128xf32, #tpu.memory_space<vmem>>, vector<1x2x128xf32>,
    return
  }
  func.func @transform_0(%arg0: i32) -> (i32, i32) {
    %c0_i32 = arith.constant 0 : i32
    %c0_i32_0 = arith.constant 0 : i32
    return %arg0, %c0_i32 : i32, i32
  }
  func.func @transform_1(%arg0: i32) -> (i32, i32, i32) {
    %c0_i32 = arith.constant 0 : i32
    %c0_i32_0 = arith.constant 0 : i32
    %c0_i32_1 = arith.constant 0 : i32
    %c0_i32_2 = arith.constant 0 : i32
    return %c0_i32, %c0_i32_0, %c0_i32_1 : i32, i32, i32
  }
  func.func @transform_2(%arg0: i32) -> (i32, i32) {
    %c0_i32 = arith.constant 0 : i32
    %c0_i32_0 = arith.constant 0 : i32
    %c0_i32_1 = arith.constant 0 : i32
    return %c0_i32, %c0_i32_0 : i32, i32
  }
  func.func @transform_3(%arg0: i32) -> (i32, i32) {
    %c0_i32 = arith.constant 0 : i32
    %c0_i32_0 = arith.constant 0 : i32
    %c0_i32_1 = arith.constant 0 : i32
    return %c0_i32, %c0_i32_0 : i32, i32
  }
  func.func @transform_4(%arg0: i32) -> (i32, i32) {
    %c0_i32 = arith.constant 0 : i32
    %c0_i32_0 = arith.constant 0 : i32
    return %arg0, %c0_i32 : i32, i32
  }
  func.func @transform_5(%arg0: i32) -> (i32, i32, i32) {
    %c0_i32 = arith.constant 0 : i32
    %c0_i32_0 = arith.constant 0 : i32
    %c0_i32_1 = arith.constant 0 : i32
    return %arg0, %c0_i32, %c0_i32_0 : i32, i32, i32
  }
}

</mosaic_0001>

<llo_original>
// kernel: tile.13
$region0: #{tile.13}
  #allocation0 [shape = 's32[1]{0}', space=sflag, size = 0x4, scoped, tag = 'scoped memory for tile.13']
  %s0 = inlined_call_operand.vmem [shape: f32[8], index: 0, kind: input, shape index: {}]
  %s1 = inlined_call_operand.vmem [shape: f32[16,8], index: 1, kind: output, shape index: {}]
  // Predicated region
  $region2: #{tile.13} parent=0 // pred_check
    _
  $region3: #{tile.13} parent=0 // pred_check_branch
    %3 = sbr.rel (0) target = $region5
  $region4: #{tile.13} parent=0 // pred_region
    _
  $region5: #{tile.13} parent=0 // pred_fallthru
    _
  %v4 = vld [vmem:[%s0] ss:$0 sm:$0xff]
  %5 = vst [vmem:[%s1] sm:$0xff] %v4
  %s6 = scalar_lea.vmem %s1, 8
  %7 = vst [vmem:[%s6] sm:$0xff] %v4

// kernel: tile.14
$region0: #{tile.14}
  %s0 = inlined_call_operand.vmem [shape: f32[16,8], index: 0, kind: input, shape index: {}]
  %s1 = inlined_call_operand.vmem [shape: f32[1,128], index: 1, kind: output, shape index: {}]
  $region1: #{tile.14} parent=0
    #allocation0 [shape = 'u8[4096]{0}', space=vmem, size = 0x1000, scoped, tag = 'scoped mem for output reshape']
    %v2 = vld [vmem:[%s0] sm:$0x1]
    %vm3 = vcmask 64512
    %4 = vst.msk [vmem:[#allocation0] sm:$0x1] %vm3, %v2
    %s5 = scalar_lea.vmem %s0, 15
    %v6 = vld [vmem:[%s5] sm:$0x1]
    %7 = vrot.lane.b32.xlu0 %v6, 120
    %v8 = vpop.permute.xlu0 %7
    %vm9 = vcmask 1048512
    %10 = vst.msk [vmem:[#allocation0] sm:$0x1] %vm9, %v8
    %s11 = scalar_lea.vmem %s0, 14
    %v12 = vld [vmem:[%s11] sm:$0x1]
    %13 = vrot.lane.b32.xlu0 %v12, 112
    %v14 = vpop.permute.xlu0 %13
    %vm15 = vcmask 982912
    %16 = vst.msk [vmem:[#allocation0] sm:$0x1] %vm15, %v14
    %s17 = scalar_lea.vmem %s0, 13
    %v18 = vld [vmem:[%s17] sm:$0x1]
    %19 = vrot.lane.b32.xlu0 %v18, 104
    %v20 = vpop.permute.xlu0 %19
    %vm21 = vcmask 917312
    %22 = vst.msk [vmem:[#allocation0] sm:$0x1] %vm21, %v20
    %s23 = scalar_lea.vmem %s0, 12
    %v24 = vld [vmem:[%s23] sm:$0x1]
    %25 = vrot.lane.b32.xlu0 %v24, 96
    %v26 = vpop.permute.xlu0 %25
    %vm27 = vcmask 851712
    %28 = vst.msk [vmem:[#allocation0] sm:$0x1] %vm27, %v26
    %s29 = scalar_lea.vmem %s0, 11
    %v30 = vld [vmem:[%s29] sm:$0x1]
    %31 = vrot.lane.b32.xlu0 %v30, 88
    %v32 = vpop.permute.xlu0 %31
    %vm33 = vcmask 786112
    %34 = vst.msk [vmem:[#allocation0] sm:$0x1] %vm33, %v32
    %s35 = scalar_lea.vmem %s0, 10
    %v36 = vld [vmem:[%s35] sm:$0x1]
    %37 = vrot.lane.b32.xlu0 %v36, 80
    %v38 = vpop.permute.xlu0 %37
    %vm39 = vcmask 720512
    %40 = vst.msk [vmem:[#allocation0] sm:$0x1] %vm39, %v38
    %s41 = scalar_lea.vmem %s0, 9
    %v42 = vld [vmem:[%s41] sm:$0x1]
    %43 = vrot.lane.b32.xlu0 %v42, 72
    %v44 = vpop.permute.xlu0 %43
    %vm45 = vcmask 654912
    %46 = vst.msk [vmem:[#allocation0] sm:$0x1] %vm45, %v44
    %s47 = scalar_lea.vmem %s0, 8
    %v48 = vld [vmem:[%s47] sm:$0x1]
    %49 = vrot.lane.b32.xlu0 %v48, 64
    %v50 = vpop.permute.xlu0 %49
    %vm51 = vcmask 589312
    %52 = vst.msk [vmem:[#allocation0] sm:$0x1] %vm51, %v50
    %s53 = scalar_lea.vmem %s0, 7
    %v54 = vld [vmem:[%s53] sm:$0x1]
    %55 = vrot.lane.b32.xlu0 %v54, 56
    %v56 = vpop.permute.xlu0 %55
    %vm57 = vcmask 523712
    %58 = vst.msk [vmem:[#allocation0] sm:$0x1] %vm57, %v56
    %s59 = scalar_lea.vmem %s0, 6
    %v60 = vld [vmem:[%s59] sm:$0x1]
    %61 = vrot.lane.b32.xlu0 %v60, 48
    %v62 = vpop.permute.xlu0 %61
    %vm63 = vcmask 458112
    %64 = vst.msk [vmem:[#allocation0] sm:$0x1] %vm63, %v62
    %s65 = scalar_lea.vmem %s0, 5
    %v66 = vld [vmem:[%s65] sm:$0x1]
    %67 = vrot.lane.b32.xlu0 %v66, 40
    %v68 = vpop.permute.xlu0 %67
    %vm69 = vcmask 392512
    %70 = vst.msk [vmem:[#allocation0] sm:$0x1] %vm69, %v68
    %s71 = scalar_lea.vmem %s0, 4
    %v72 = vld [vmem:[%s71] sm:$0x1]
    %73 = vrot.lane.b32.xlu0 %v72, 32
    %v74 = vpop.permute.xlu0 %73
    %vm75 = vcmask 326912
    %76 = vst.msk [vmem:[#allocation0] sm:$0x1] %vm75, %v74
    %s77 = scalar_lea.vmem %s0, 3
    %v78 = vld [vmem:[%s77] sm:$0x1]
    %79 = vrot.lane.b32.xlu0 %v78, 24
    %v80 = vpop.permute.xlu0 %79
    %vm81 = vcmask 261312
    %82 = vst.msk [vmem:[#allocation0] sm:$0x1] %vm81, %v80
    %s83 = scalar_lea.vmem %s0, 2
    %v84 = vld [vmem:[%s83] sm:$0x1]
    %85 = vrot.lane.b32.xlu0 %v84, 16
    %v86 = vpop.permute.xlu0 %85
    %vm87 = vcmask 195712
    %88 = vst.msk [vmem:[#allocation0] sm:$0x1] %vm87, %v86
    %s89 = scalar_lea.vmem %s0, 1
    %v90 = vld [vmem:[%s89] sm:$0x1]
    %91 = vrot.lane.b32.xlu0 %v90, 8
    %v92 = vpop.permute.xlu0 %91
    %vm93 = vcmask 130112
    %94 = vst.msk [vmem:[#allocation0] sm:$0x1] %vm93, %v92
    %s96 = sshllo.u32 0, 1
    %v98 = vld [vmem:[#allocation0] sm:%s96]
    %s99 = sshllo.u32 0, 1
    %100 = vst [vmem:[%s1] sm:%s99] %v98

// kernel: track_layer_forward.1
$region0: #{track_layer_forward.1}
  #allocation0 [shape = 'u32[]', space=smem, size = 0x4, offset = 0x4, fixed_abs, tag = 'smem constant byte address 0x4 - core index']
  #allocation1 [shape = 'u32[144,128]{1,0:T(1,128)}', space=vmem, size = 0x12000, scoped, tag = 'internal scratch']
  %s0 = inlined_call_operand.vmem [shape: bf16[48,128], index: 0, kind: input, shape index: {}]
  %s1 = inlined_call_operand.vmem [shape: bf16[3,128,128], index: 1, kind: input, shape index: {}]
  %s2 = inlined_call_operand.vmem [shape: f32[1,128], index: 2, kind: input, shape index: {}]
  %s3 = inlined_call_operand.vmem [shape: f32[128,128], index: 3, kind: input, shape index: {}]
  %s4 = inlined_call_operand.vmem [shape: f32[32,128], index: 4, kind: output, shape index: {0}]
  %s5 = inlined_call_operand.vmem [shape: f32[1,2,128], index: 5, kind: output, shape index: {1}]
  %6 = xla_tuple %s4, %s5
  %s7 = sld [smem:[#allocation0]]
  $region34: #{track_layer_forward.1} parent=0
    _
  %s9 = ssub.s32 1, %s7
  %s10 = scalar_select 0, %s9, %s7
  // Predicated region
  $region2: #{track_layer_forward.1} parent=0 // pred_check
    _
  $region3: #{track_layer_forward.1} parent=0 // pred_check_branch
    %12 = sbr.rel (0) target = $region5
  $region4: #{track_layer_forward.1} parent=0 // pred_region
    _
  $region5: #{track_layer_forward.1} parent=0 // pred_fallthru
    _
  // Predicated region
  $region6: #{track_layer_forward.1} parent=0 // pred_check
    _
  $region7: #{track_layer_forward.1} parent=0 // pred_check_branch
    %14 = sbr.rel (0) target = $region9
  $region8: #{track_layer_forward.1} parent=0 // pred_region
    _
  $region9: #{track_layer_forward.1} parent=0 // pred_fallthru
    _
  // Predicated region
  $region10: #{track_layer_forward.1} parent=0 // pred_check
    _
  $region11: #{track_layer_forward.1} parent=0 // pred_check_branch
    %16 = sbr.rel (0) target = $region13
  $region12: #{track_layer_forward.1} parent=0 // pred_region
    _
  $region13: #{track_layer_forward.1} parent=0 // pred_fallthru
    _
  // Predicated region
  $region14: #{track_layer_forward.1} parent=0 // pred_check
    _
  $region15: #{track_layer_forward.1} parent=0 // pred_check_branch
    %18 = sbr.rel (0) target = $region17
  $region16: #{track_layer_forward.1} parent=0 // pred_region
    _
  $region17: #{track_layer_forward.1} parent=0 // pred_fallthru
    _
  %v20 = vld [vmem:[%s0] sm:$0xf]
  %v21 = vld [vmem:[%s0 + $0x4] sm:$0xf]
  %v22 = vld [vmem:[%s0 + $0x8] sm:$0xf]
  %v23 = vld [vmem:[%s0 + $0xc] sm:$0xf]
  %v24 = vld [vmem:[%s0 + $0x10] sm:$0x1]
  %v25 = vld [vmem:[%s1] sm:$0xf]
  %v26 = vld [vmem:[%s1 + $0x4] sm:$0xf]
  %v27 = vld [vmem:[%s1 + $0x8] sm:$0xf]
  %v28 = vld [vmem:[%s1 + $0xc] sm:$0xf]
  %v29 = vld [vmem:[%s1 + $0x10] sm:$0xf]
  %v30 = vld [vmem:[%s1 + $0x14] sm:$0xf]
  %v31 = vld [vmem:[%s1 + $0x18] sm:$0xf]
  %v32 = vld [vmem:[%s1 + $0x1c] sm:$0xf]
  %v33 = vld [vmem:[%s1 + $0x20] sm:$0xf]
  %v34 = vld [vmem:[%s1 + $0x24] sm:$0xf]
  %v35 = vld [vmem:[%s1 + $0x28] sm:$0xf]
  %v36 = vld [vmem:[%s1 + $0x2c] sm:$0xf]
  %v37 = vld [vmem:[%s1 + $0x30] sm:$0xf]
  %v38 = vld [vmem:[%s1 + $0x34] sm:$0xf]
  %v39 = vld [vmem:[%s1 + $0x38] sm:$0xf]
  %v40 = vld [vmem:[%s1 + $0x3c] sm:$0xf]
  %s41 = scalar_lea.vmem %s1, 64
  %v42 = vld [vmem:[%s41] sm:$0xf]
  %v43 = vld [vmem:[%s41 + $0x4] sm:$0xf]
  %v44 = vld [vmem:[%s41 + $0x8] sm:$0xf]
  %v45 = vld [vmem:[%s41 + $0xc] sm:$0xf]
  %v46 = vld [vmem:[%s41 + $0x10] sm:$0xf]
  %v47 = vld [vmem:[%s41 + $0x14] sm:$0xf]
  %v48 = vld [vmem:[%s41 + $0x18] sm:$0xf]
  %v49 = vld [vmem:[%s41 + $0x1c] sm:$0xf]
  %v50 = vld [vmem:[%s41 + $0x20] sm:$0xf]
  %v51 = vld [vmem:[%s41 + $0x24] sm:$0xf]
  %v52 = vld [vmem:[%s41 + $0x28] sm:$0xf]
  %v53 = vld [vmem:[%s41 + $0x2c] sm:$0xf]
  %v54 = vld [vmem:[%s41 + $0x30] sm:$0xf]
  %v55 = vld [vmem:[%s41 + $0x34] sm:$0xf]
  %v56 = vld [vmem:[%s41 + $0x38] sm:$0xf]
  %v57 = vld [vmem:[%s41 + $0x3c] sm:$0xf]
  %v63 = vunpack.c.l.b16 %v20
  %v64 = vunpack.c.l.b16 %v21
  %v65 = vunpack.c.l.b16 %v22
  %v66 = vunpack.c.l.b16 %v23
  %v67 = vunpack.c.l.b16 %v24
  %v68 = vpack.c.b16 %v64, %v63
  %v69 = vpack.c.b16 %v66, %v65
  %v70 = vpack.c.b16 %v67, %v67
  %vm71 = vsmask.f32 7424
  %v73 = vshrl.u32 %v68, 16
  %v75 = vshll.u32 %v68, 16
  %v77 = vrot.slane %v75, 1
  %v78 = vor.u32 %v73, %v77
  %v80 = vshll.u32 %v69, 16
  %v82 = vrot.slane %v80, 1
  %v83 = vsel %vm71, %v78, %v82
  %v84 = vshrl.u32 %v69, 16
  %v86 = vor.u32 %v84, %v82
  %v88 = vshll.u32 %v70, 16
  %v90 = vrot.slane %v88, 1
  %v91 = vsel %vm71, %v86, %v90
  %v92 = vshrl.u32 %v70, 16
  %v113 = vunpack.c.l.b16 %v42
  %v114 = vunpack.c.l.b16 %v43
  %v115 = vunpack.c.l.b16 %v44
  %v116 = vunpack.c.l.b16 %v45
  %v117 = vunpack.c.l.b16 %v46
  %v118 = vunpack.c.l.b16 %v47
  %v119 = vunpack.c.l.b16 %v48
  %v120 = vunpack.c.l.b16 %v49
  %v121 = vunpack.c.l.b16 %v50
  %v122 = vunpack.c.l.b16 %v51
  %v123 = vunpack.c.l.b16 %v52
  %v124 = vunpack.c.l.b16 %v53
  %v125 = vunpack.c.l.b16 %v54
  %v126 = vunpack.c.l.b16 %v55
  %v127 = vunpack.c.l.b16 %v56
  %v128 = vunpack.c.l.b16 %v57
  %v129 = vpack.c.b16 %v114, %v113
  %v130 = vpack.c.b16 %v116, %v115
  %v131 = vpack.c.b16 %v118, %v117
  %v132 = vpack.c.b16 %v120, %v119
  %v133 = vpack.c.b16 %v122, %v121
  %v134 = vpack.c.b16 %v124, %v123
  %v135 = vpack.c.b16 %v126, %v125
  %v136 = vpack.c.b16 %v128, %v127
  %145 = vmatprep.subr.bf16.mxu0 0
  %146 = vmatpush1.bf16.msra.mxu0 %v129
  %147 = vmatprep.subr.bf16.mxu0 0
  %148 = vmatpush1.bf16.msra.mxu0 %v130
  %149 = vmatprep.subr.bf16.mxu0 0
  %150 = vmatpush1.bf16.msra.mxu0 %v131
  %151 = vmatprep.subr.bf16.mxu0 0
  %152 = vmatpush1.bf16.msra.mxu0 %v132
  %153 = vmatprep.subr.bf16.mxu0 0
  %154 = vmatpush1.bf16.msra.mxu0 %v133
  %155 = vmatprep.subr.bf16.mxu0 0
  %156 = vmatpush1.bf16.msra.mxu0 %v134
  %157 = vmatprep.subr.bf16.mxu0 0
  %158 = vmatpush1.bf16.msra.mxu0 %v135
  %159 = vmatprep.subr.bf16.mxu0 0
  %160 = vmatpush1.bf16.msra.mxu0 %v136
  %161 = vmatprep.subr.bf16.mxu0 0
  %162 = vmatpush1.bf16.msra.mxu0 0
  %163 = vmatprep.subr.bf16.mxu0 0
  %164 = vmatpush1.bf16.msra.mxu0 0
  %165 = vmatprep.subr.bf16.mxu0 0
  %166 = vmatpush1.bf16.msra.mxu0 0
  %167 = vmatprep.subr.bf16.mxu0 0
  %168 = vmatpush1.bf16.msra.mxu0 0
  %169 = vmatprep.subr.bf16.mxu0 0
  %170 = vmatpush1.bf16.msra.mxu0 0
  %171 = vmatprep.subr.bf16.mxu0 0
  %172 = vmatpush1.bf16.msra.mxu0 0
  %173 = vmatprep.subr.bf16.mxu0 0
  %174 = vmatpush1.bf16.msra.mxu0 0
  %175 = vmatprep.subr.bf16.mxu0 0
  %176 = vmatpush1.bf16.msra.mxu0 0
  %177 = vmatprep.mubr.bf16.mxu0 0
  %178 = vmatmul.mubr.bf16.gmra.mrb[0].mxu0 %v83
  %v179 = vpop.f32.mrb[0].mxu0
  %v180 = vadd.f32 0.0, %v179
  %v181 = vpop.f32.mrb[0].mxu0
  %v182 = vpop.f32.mrb[0].mxu0
  %v183 = vadd.f32 0.0, %v182
  %v184 = vpop.f32.mrb[0].mxu0
  %185 = vmatprep.mubr.bf16.mxu0 0
  %186 = vmatmul.mubr.bf16.gmra.mrb[0].mxu0 %v91
  %v187 = vpop.f32.mrb[0].mxu0
  %v188 = vadd.f32 0.0, %v187
  %v189 = vpop.f32.mrb[0].mxu0
  %v190 = vpop.f32.mrb[0].mxu0
  %v191 = vadd.f32 0.0, %v190
  %v192 = vpop.f32.mrb[0].mxu0
  %193 = vmatprep.mubr.bf16.mxu0 0
  %194 = vmatmul.mubr.bf16.gmra.mrb[0].mxu0 %v92
  %v195 = vpop.f32.mrb[0].mxu0
  %v196 = vadd.f32 0.0, %v195
  %v197 = vpop.f32.mrb[0].mxu0
  %v198 = vpop.f32.mrb[0].mxu0
  %v199 = vpop.f32.mrb[0].mxu0
  %200 = vdwg.mxu0
  %v220 = vunpack.c.l.b16 %v25
  %v221 = vunpack.c.l.b16 %v26
  %v222 = vunpack.c.l.b16 %v27
  %v223 = vunpack.c.l.b16 %v28
  %v224 = vunpack.c.l.b16 %v29
  %v225 = vunpack.c.l.b16 %v30
  %v226 = vunpack.c.l.b16 %v31
  %v227 = vunpack.c.l.b16 %v32
  %v228 = vunpack.c.l.b16 %v33
  %v229 = vunpack.c.l.b16 %v34
  %v230 = vunpack.c.l.b16 %v35
  %v231 = vunpack.c.l.b16 %v36
  %v232 = vunpack.c.l.b16 %v37
  %v233 = vunpack.c.l.b16 %v38
  %v234 = vunpack.c.l.b16 %v39
  %v235 = vunpack.c.l.b16 %v40
  %v236 = vpack.c.b16 %v221, %v220
  %v237 = vpack.c.b16 %v223, %v222
  %v238 = vpack.c.b16 %v225, %v224
  %v239 = vpack.c.b16 %v227, %v226
  %v240 = vpack.c.b16 %v229, %v228
  %v241 = vpack.c.b16 %v231, %v230
  %v242 = vpack.c.b16 %v233, %v232
  %v243 = vpack.c.b16 %v235, %v234
  %252 = vmatprep.subr.bf16.mxu0 0
  %253 = vmatpush1.bf16.msra.mxu0 %v236
  %254 = vmatprep.subr.bf16.mxu0 0
  %255 = vmatpush1.bf16.msra.mxu0 %v237
  %256 = vmatprep.subr.bf16.mxu0 0
  %257 = vmatpush1.bf16.msra.mxu0 %v238
  %258 = vmatprep.subr.bf16.mxu0 0
  %259 = vmatpush1.bf16.msra.mxu0 %v239
  %260 = vmatprep.subr.bf16.mxu0 0
  %261 = vmatpush1.bf16.msra.mxu0 %v240
  %262 = vmatprep.subr.bf16.mxu0 0
  %263 = vmatpush1.bf16.msra.mxu0 %v241
  %264 = vmatprep.subr.bf16.mxu0 0
  %265 = vmatpush1.bf16.msra.mxu0 %v242
  %266 = vmatprep.subr.bf16.mxu0 0
  %267 = vmatpush1.bf16.msra.mxu0 %v243
  %268 = vmatprep.subr.bf16.mxu0 0
  %269 = vmatpush1.bf16.msra.mxu0 0
  %270 = vmatprep.subr.bf16.mxu0 0
  %271 = vmatpush1.bf16.msra.mxu0 0
  %272 = vmatprep.subr.bf16.mxu0 0
  %273 = vmatpush1.bf16.msra.mxu0 0
  %274 = vmatprep.subr.bf16.mxu0 0
  %275 = vmatpush1.bf16.msra.mxu0 0
  %276 = vmatprep.subr.bf16.mxu0 0
  %277 = vmatpush1.bf16.msra.mxu0 0
  %278 = vmatprep.subr.bf16.mxu0 0
  %279 = vmatpush1.bf16.msra.mxu0 0
  %280 = vmatprep.subr.bf16.mxu0 0
  %281 = vmatpush1.bf16.msra.mxu0 0
  %282 = vmatprep.subr.bf16.mxu0 0
  %283 = vmatpush1.bf16.msra.mxu0 0
  %284 = vmatprep.mubr.bf16.mxu0 0
  %285 = vmatmul.mubr.bf16.gmra.mrb[0].mxu0 %v68
  %v286 = vpop.f32.mrb[0].mxu0
  %v287 = vadd.f32 %v180, %v286
  %v288 = vpop.f32.mrb[0].mxu0
  %v289 = vpop.f32.mrb[0].mxu0
  %v290 = vadd.f32 %v183, %v289
  %v291 = vpop.f32.mrb[0].mxu0
  %292 = vmatprep.mubr.bf16.mxu0 0
  %293 = vmatmul.mubr.bf16.gmra.mrb[0].mxu0 %v69
  %v294 = vpop.f32.mrb[0].mxu0
  %v295 = vadd.f32 %v188, %v294
  %v296 = vpop.f32.mrb[0].mxu0
  %v297 = vpop.f32.mrb[0].mxu0
  %v298 = vadd.f32 %v191, %v297
  %v299 = vpop.f32.mrb[0].mxu0
  %300 = vmatprep.mubr.bf16.mxu0 0
  %301 = vmatmul.mubr.bf16.gmra.mrb[0].mxu0 %v70
  %v302 = vpop.f32.mrb[0].mxu0
  %v303 = vadd.f32 %v196, %v302
  %v304 = vpop.f32.mrb[0].mxu0
  %v305 = vpop.f32.mrb[0].mxu0
  %v306 = vpop.f32.mrb[0].mxu0
  %307 = vdwg.mxu0
  %v308 = vld [vmem:[%s0] sm:$0xe]
  %v309 = vld [vmem:[%s0 + $0x10] sm:$0x3]
  %s310 = scalar_lea.vmem %s1, 128
  %v311 = vld [vmem:[%s310] sm:$0xf]
  %v312 = vld [vmem:[%s310 + $0x4] sm:$0xf]
  %v313 = vld [vmem:[%s310 + $0x8] sm:$0xf]
  %v314 = vld [vmem:[%s310 + $0xc] sm:$0xf]
  %v315 = vld [vmem:[%s310 + $0x10] sm:$0xf]
  %v316 = vld [vmem:[%s310 + $0x14] sm:$0xf]
  %v317 = vld [vmem:[%s310 + $0x18] sm:$0xf]
  %v318 = vld [vmem:[%s310 + $0x1c] sm:$0xf]
  %v319 = vld [vmem:[%s310 + $0x20] sm:$0xf]
  %v320 = vld [vmem:[%s310 + $0x24] sm:$0xf]
  %v321 = vld [vmem:[%s310 + $0x28] sm:$0xf]
  %v322 = vld [vmem:[%s310 + $0x2c] sm:$0xf]
  %v323 = vld [vmem:[%s310 + $0x30] sm:$0xf]
  %v324 = vld [vmem:[%s310 + $0x34] sm:$0xf]
  %v325 = vld [vmem:[%s310 + $0x38] sm:$0xf]
  %v326 = vld [vmem:[%s310 + $0x3c] sm:$0xf]
  %v329 = vunpack.c.l.b16 %v308
  %v330 = vunpack.c.l.b16 %v309
  %v331 = vpack.c.b16 %v64, %v329
  %v332 = vpack.c.b16 %v330, %v330
  %vm333 = vcmask 1046528
  %v334 = vrot.slane %v331, 1
  %v335 = vrot.slane %v69, 1
  %v336 = vsel %vm333, %v334, %v335
  %v337 = vrot.slane %v332, 1
  %v338 = vsel %vm333, %v335, %v337
  %v358 = vunpack.c.l.b16 %v311
  %v359 = vunpack.c.l.b16 %v312
  %v360 = vunpack.c.l.b16 %v313
  %v361 = vunpack.c.l.b16 %v314
  %v362 = vunpack.c.l.b16 %v315
  %v363 = vunpack.c.l.b16 %v316
  %v364 = vunpack.c.l.b16 %v317
  %v365 = vunpack.c.l.b16 %v318
  %v366 = vunpack.c.l.b16 %v319
  %v367 = vunpack.c.l.b16 %v320
  %v368 = vunpack.c.l.b16 %v321
  %v369 = vunpack.c.l.b16 %v322
  %v370 = vunpack.c.l.b16 %v323
  %v371 = vunpack.c.l.b16 %v324
  %v372 = vunpack.c.l.b16 %v325
  %v373 = vunpack.c.l.b16 %v326
  %v374 = vpack.c.b16 %v359, %v358
  %v375 = vpack.c.b16 %v361, %v360
  %v376 = vpack.c.b16 %v363, %v362
  %v377 = vpack.c.b16 %v365, %v364
  %v378 = vpack.c.b16 %v367, %v366
  %v379 = vpack.c.b16 %v369, %v368
  %v380 = vpack.c.b16 %v371, %v370
  %v381 = vpack.c.b16 %v373, %v372
  %390 = vmatprep.subr.bf16.mxu0 0
  %391 = vmatpush1.bf16.msra.mxu0 %v374
  %392 = vmatprep.subr.bf16.mxu0 0
  %393 = vmatpush1.bf16.msra.mxu0 %v375
  %394 = vmatprep.subr.bf16.mxu0 0
  %395 = vmatpush1.bf16.msra.mxu0 %v376
  %396 = vmatprep.subr.bf16.mxu0 0
  %397 = vmatpush1.bf16.msra.mxu0 %v377
  %398 = vmatprep.subr.bf16.mxu0 0
  %399 = vmatpush1.bf16.msra.mxu0 %v378
  %400 = vmatprep.subr.bf16.mxu0 0
  %401 = vmatpush1.bf16.msra.mxu0 %v379
  %402 = vmatprep.subr.bf16.mxu0 0
  %403 = vmatpush1.bf16.msra.mxu0 %v380
  %404 = vmatprep.subr.bf16.mxu0 0
  %405 = vmatpush1.bf16.msra.mxu0 %v381
  %406 = vmatprep.subr.bf16.mxu0 0
  %407 = vmatpush1.bf16.msra.mxu0 0
  %408 = vmatprep.subr.bf16.mxu0 0
  %409 = vmatpush1.bf16.msra.mxu0 0
  %410 = vmatprep.subr.bf16.mxu0 0
  %411 = vmatpush1.bf16.msra.mxu0 0
  %412 = vmatprep.subr.bf16.mxu0 0
  %413 = vmatpush1.bf16.msra.mxu0 0
  %414 = vmatprep.subr.bf16.mxu0 0
  %415 = vmatpush1.bf16.msra.mxu0 0
  %416 = vmatprep.subr.bf16.mxu0 0
  %417 = vmatpush1.bf16.msra.mxu0 0
  %418 = vmatprep.subr.bf16.mxu0 0
  %419 = vmatpush1.bf16.msra.mxu0 0
  %420 = vmatprep.subr.bf16.mxu0 0
  %421 = vmatpush1.bf16.msra.mxu0 0
  %422 = vmatprep.mubr.bf16.mxu0 0
  %423 = vmatmul.mubr.bf16.gmra.mrb[0].mxu0 %v336
  %v424 = vpop.f32.mrb[0].mxu0
  %v425 = vadd.f32 0.0, %v424
  %v426 = vpop.f32.mrb[0].mxu0
  %v427 = vpop.f32.mrb[0].mxu0
  %v428 = vadd.f32 0.0, %v427
  %v429 = vpop.f32.mrb[0].mxu0
  %430 = vmatprep.mubr.bf16.mxu0 0
  %431 = vmatmul.mubr.bf16.gmra.mrb[0].mxu0 %v338
  %v432 = vpop.f32.mrb[0].mxu0
  %v433 = vadd.f32 0.0, %v432
  %v434 = vpop.f32.mrb[0].mxu0
  %v435 = vpop.f32.mrb[0].mxu0
  %v436 = vadd.f32 0.0, %v435
  %v437 = vpop.f32.mrb[0].mxu0
  %438 = vmatprep.mubr.bf16.mxu0 0
  %439 = vmatmul.mubr.bf16.gmra.mrb[0].mxu0 %v337
  %v440 = vpop.f32.mrb[0].mxu0
  %v441 = vadd.f32 0.0, %v440
  %v442 = vpop.f32.mrb[0].mxu0
  %v443 = vpop.f32.mrb[0].mxu0
  %v444 = vpop.f32.mrb[0].mxu0
  %445 = vdwg.mxu0
  %v446 = vadd.f32 %v287, %v425
  %v447 = vadd.f32 %v290, %v428
  %v448 = vadd.f32 %v295, %v433
  %v449 = vadd.f32 %v298, %v436
  %v450 = vadd.f32 %v303, %v441
  %v451 = vld [vmem:[%s2] sm:$0x1]
  %v453 = vlaneseq
  %v454 = vshrl.u32 %v453, 7
  %v455 = vsub.s32 0, %v454
  %v456 = vrot.slane %v451, %v455
  %v458 = vadd.f32 %v446, %v456
  %v459 = vadd.f32 %v447, %v456
  %460 = vst [vmem:[%s4] sm:$0xff] %v458
  %461 = vst [vmem:[%s4 + $0x8] sm:$0xff] %v459
  %v462 = vadd.f32 %v446, %v447
  %v463 = vrot.slane %v462, 4
  %v464 = vadd.f32 %v462, %v463
  %v465 = vrot.slane %v464, 2
  %v466 = vadd.f32 %v464, %v465
  %v467 = vrot.slane %v466, 1
  %v468 = vadd.f32 %v466, %v467
  %v469 = vadd.f32 %v468, 0.0
  %v470 = vmul.f32 %v446, %v446
  %v471 = vmul.f32 %v447, %v447
  %v472 = vadd.f32 %v470, %v471
  %v473 = vrot.slane %v472, 4
  %v474 = vadd.f32 %v472, %v473
  %v475 = vrot.slane %v474, 2
  %v476 = vadd.f32 %v474, %v475
  %v477 = vrot.slane %v476, 1
  %v478 = vadd.f32 %v476, %v477
  %v479 = vadd.f32 %v478, 0.0
  %v480 = vadd.f32 %v448, %v456
  %v481 = vadd.f32 %v449, %v456
  %v482 = vadd.f32 %v450, %v456
  %483 = vst [vmem:[%s4 + $0xf] sm:$0xfe] %v480
  %484 = vst [vmem:[%s4 + $0x17] sm:$0xff] %v481
  %485 = vst [vmem:[%s4 + $0x1f] sm:$0x1] %v482
  %vm489 = vcmask 1046528
  %v490 = vrot.slane %v448, 1
  %v491 = vrot.slane %v449, 1
  %v492 = vsel %vm489, %v490, %v491
  %v493 = vrot.slane %v450, 1
  %v494 = vsel %vm489, %v491, %v493
  %v497 = vadd.f32 %v492, %v494
  %v498 = vrot.slane %v497, 4
  %v499 = vadd.f32 %v497, %v498
  %v500 = vrot.slane %v499, 2
  %v501 = vadd.f32 %v499, %v500
  %v502 = vrot.slane %v501, 1
  %v503 = vadd.f32 %v501, %v502
  %v504 = vadd.f32 %v469, %v503
  %v505 = vmul.f32 %v448, %v448
  %v506 = vmul.f32 %v449, %v449
  %v507 = vmul.f32 %v450, %v450
  %v511 = vrot.slane %v505, 1
  %v512 = vrot.slane %v506, 1
  %v513 = vsel %vm489, %v511, %v512
  %v514 = vrot.slane %v507, 1
  %v515 = vsel %vm489, %v512, %v514
  %v518 = vadd.f32 %v513, %v515
  %v519 = vrot.slane %v518, 4
  %v520 = vadd.f32 %v518, %v519
  %v521 = vrot.slane %v520, 2
  %v522 = vadd.f32 %v520, %v521
  %v523 = vrot.slane %v522, 1
  %v524 = vadd.f32 %v522, %v523
  %v525 = vadd.f32 %v479, %v524
  %vm526 = vcmask 1040384
  %v527 = vsel %vm526, %v504, %v525
  %v528 = vld [vmem:[%s3] sm:$0xff]
  %v529 = vld [vmem:[%s3 + $0x8] sm:$0xff]
  %v530 = vld [vmem:[%s3 + $0x10] sm:$0xff]
  %v531 = vld [vmem:[%s3 + $0x18] sm:$0xff]
  %v532 = vld [vmem:[%s3 + $0x20] sm:$0xff]
  %v533 = vld [vmem:[%s3 + $0x28] sm:$0xff]
  %v534 = vld [vmem:[%s3 + $0x30] sm:$0xff]
  %v535 = vld [vmem:[%s3 + $0x38] sm:$0xff]
  %v536 = vld [vmem:[%s3 + $0x40] sm:$0xff]
  %v537 = vld [vmem:[%s3 + $0x48] sm:$0xff]
  %v538 = vld [vmem:[%s3 + $0x50] sm:$0xff]
  %v539 = vld [vmem:[%s3 + $0x58] sm:$0xff]
  %v540 = vld [vmem:[%s3 + $0x60] sm:$0xff]
  %v541 = vld [vmem:[%s3 + $0x68] sm:$0xff]
  %v542 = vld [vmem:[%s3 + $0x70] sm:$0xff]
  %v543 = vld [vmem:[%s3 + $0x78] sm:$0xff]
  %544 = vmatprep.subr.mxu0 0.0
  %545 = vmatpush1.msra.mxu0 %v528
  %546 = vmatprep.subr.mxu0 0.0
  %547 = vmatpush1.msra.mxu0 %v529
  %548 = vmatprep.subr.mxu0 0.0
  %549 = vmatpush1.msra.mxu0 %v530
  %550 = vmatprep.subr.mxu0 0.0
  %551 = vmatpush1.msra.mxu0 %v531
  %552 = vmatprep.subr.mxu0 0.0
  %553 = vmatpush1.msra.mxu0 %v532
  %554 = vmatprep.subr.mxu0 0.0
  %555 = vmatpush1.msra.mxu0 %v533
  %556 = vmatprep.subr.mxu0 0.0
  %557 = vmatpush1.msra.mxu0 %v534
  %558 = vmatprep.subr.mxu0 0.0
  %559 = vmatpush1.msra.mxu0 %v535
  %560 = vmatprep.subr.mxu0 0.0
  %561 = vmatpush1.msra.mxu0 %v536
  %562 = vmatprep.subr.mxu0 0.0
  %563 = vmatpush1.msra.mxu0 %v537
  %564 = vmatprep.subr.mxu0 0.0
  %565 = vmatpush1.msra.mxu0 %v538
  %566 = vmatprep.subr.mxu0 0.0
  %567 = vmatpush1.msra.mxu0 %v539
  %568 = vmatprep.subr.mxu0 0.0
  %569 = vmatpush1.msra.mxu0 %v540
  %570 = vmatprep.subr.mxu0 0.0
  %571 = vmatpush1.msra.mxu0 %v541
  %572 = vmatprep.subr.mxu0 0.0
  %573 = vmatpush1.msra.mxu0 %v542
  %574 = vmatprep.subr.mxu0 0.0
  %575 = vmatpush1.msra.mxu0 %v543
  %576 = vmatprep.subr.mxu0 0.0
  %577 = vmatpush1.msra.mxu0 0.0
  %578 = vmatprep.subr.mxu0 0.0
  %579 = vmatpush1.msra.mxu0 0.0
  %580 = vmatprep.subr.mxu0 0.0
  %581 = vmatpush1.msra.mxu0 0.0
  %582 = vmatprep.subr.mxu0 0.0
  %583 = vmatpush1.msra.mxu0 0.0
  %584 = vmatprep.subr.mxu0 0.0
  %585 = vmatpush1.msra.mxu0 0.0
  %586 = vmatprep.subr.mxu0 0.0
  %587 = vmatpush1.msra.mxu0 0.0
  %588 = vmatprep.subr.mxu0 0.0
  %589 = vmatpush1.msra.mxu0 0.0
  %590 = vmatprep.subr.mxu0 0.0
  %591 = vmatpush1.msra.mxu0 0.0
  %592 = vmatprep.subr.mxu0 0.0
  %593 = vmatpush1.msra.mxu0 0.0
  %594 = vmatprep.subr.mxu0 0.0
  %595 = vmatpush1.msra.mxu0 0.0
  %596 = vmatprep.subr.mxu0 0.0
  %597 = vmatpush1.msra.mxu0 0.0
  %598 = vmatprep.subr.mxu0 0.0
  %599 = vmatpush1.msra.mxu0 0.0
  %600 = vmatprep.subr.mxu0 0.0
  %601 = vmatpush1.msra.mxu0 0.0
  %602 = vmatprep.subr.mxu0 0.0
  %603 = vmatpush1.msra.mxu0 0.0
  %604 = vmatprep.subr.mxu0 0.0
  %605 = vmatpush1.msra.mxu0 0.0
  %606 = vmatprep.subr.mxu0 0.0
  %607 = vmatpush1.msra.mxu0 0.0
  %608 = vmatprep.mubr.f32.mxu0 0.0
  %609 = vmatmul.mubr.f32.gmra.mrb[0].mxu0 %v527
  %v610 = vpop.f32.mrb[0].mxu0
  %v611 = vadd.f32 0.0, %v610
  %v612 = vpop.f32.mrb[0].mxu0
  %613 = vdwg.mxu0
  %614 = vst [vmem:[%s5] sm:$0x3] %v611
  // Predicated region
  $region18: #{track_layer_forward.1} parent=0 // pred_check
    _
  $region19: #{track_layer_forward.1} parent=0 // pred_check_branch
    %616 = sbr.rel (0) target = $region21
  $region20: #{track_layer_forward.1} parent=0 // pred_region
    _
  $region21: #{track_layer_forward.1} parent=0 // pred_fallthru
    _
  // Predicated region
  $region22: #{track_layer_forward.1} parent=0 // pred_check
    _
  $region23: #{track_layer_forward.1} parent=0 // pred_check_branch
    %618 = sbr.rel (0) target = $region25
  $region24: #{track_layer_forward.1} parent=0 // pred_region
    _
  $region25: #{track_layer_forward.1} parent=0 // pred_fallthru
    _
  // Predicated region
  $region26: #{track_layer_forward.1} parent=0 // pred_check
    _
  $region27: #{track_layer_forward.1} parent=0 // pred_check_branch
    %620 = sbr.rel (0) target = $region29
  $region28: #{track_layer_forward.1} parent=0 // pred_region
    _
  $region29: #{track_layer_forward.1} parent=0 // pred_fallthru
    _
  // Predicated region
  $region30: #{track_layer_forward.1} parent=0 // pred_check
    _
  $region31: #{track_layer_forward.1} parent=0 // pred_check_branch
    %622 = sbr.rel (0) target = $region33
  $region32: #{track_layer_forward.1} parent=0 // pred_region
    _
  $region33: #{track_layer_forward.1} parent=0 // pred_fallthru
    _

</llo_original>
